<compile_context>
chip_gen: v6e
topology: v6e:2x2x1
jax: 0.10.0
libtpu: 0.0.40
codegen_flags: <defaults>
</compile_context>

<pallas_src>
import functools
from math import sqrt

import jax
import jax.numpy as jnp
from jax import lax
from jax.experimental import pallas as pl
from jax.experimental.pallas import tpu as pltpu


# ----------------------------------------------------------------------------
# Kernel
# ----------------------------------------------------------------------------
def _mhsa_kernel(x_ref, wq_ref, wk_ref, wv_ref, o_ref, q_s, k_s, v_s, *,
                 b_tile, n, num_heads, dk, dv, kv_tile, unroll_heads):
    """One grid step = b_tile batch elements, all heads.

    x_ref : (b_tile, n, dim_in)  input dtype (cast to bf16 in-kernel)
    wq_ref: (dim_in, dim_k) bf16 (softmax scale pre-folded in)
    wk_ref: (dim_in, dim_k) bf16
    wv_ref: (dim_in, dim_v) bf16
    o_ref : (b_tile, n, dim_v)   final layout; per-head direct stores
    q_s/k_s/v_s: (b_tile*n, dim_k | dim_v) bf16 VMEM scratch
    """
    rows = b_tile * n
    dim_in = x_ref.shape[-1]

    # In-kernel bf16 cast (hides under the MXU; no wrapper-side HBM round trip).
    x = x_ref[...].reshape(rows, dim_in).astype(jnp.bfloat16)

    # Fused lane-dense projections: all heads and all b_tile rows in one MXU
    # matmul each, f32 accumulate, stored as bf16 scratch for the attention.
    q_s[...] = jnp.dot(x, wq_ref[...],
                       preferred_element_type=jnp.float32).astype(jnp.bfloat16)
    k_s[...] = jnp.dot(x, wk_ref[...],
                       preferred_element_type=jnp.float32).astype(jnp.bfloat16)
    v_s[...] = jnp.dot(x, wv_ref[...],
                       preferred_element_type=jnp.float32).astype(jnp.bfloat16)

    def one_head(b, qk_off, v_off):
        r0 = b * n
        q_h = q_s[pl.ds(r0, n), pl.ds(qk_off, dk)]                  # (n, dk) bf16

        if kv_tile is None:
            # Short sequences: full (n, n) f32 scores in VMEM.
            k_h = k_s[pl.ds(r0, n), pl.ds(qk_off, dk)]
            v_h = v_s[pl.ds(r0, n), pl.ds(v_off, dv)]
            # Q.K^T contracting last dims directly (no k.T / XLU transpose).
            s = lax.dot_general(q_h, k_h, (((1,), (1,)), ((), ())),
                                preferred_element_type=jnp.float32)  # (n, n)
            s = s - jnp.max(s, axis=-1, keepdims=True)
            p = jnp.exp(s)
            denom = jnp.sum(p, axis=-1, keepdims=True)               # (n, 1)
            pv = jnp.dot(p.astype(jnp.bfloat16), v_h,
                         preferred_element_type=jnp.float32)         # (n, dv)
            # Deferred softmax normalization: scale the (n, dv) PV result,
            # not the (n, n) score matrix.
            out = pv * pl.reciprocal(denom, approx=True)
        else:
            # Long sequences: flash-style online softmax over KV tiles so the
            # full (n, n) f32 score matrix never exists in VMEM.
            def body(t, carry):
                m_i, l_i, acc = carry
                kr = r0 + pl.multiple_of(t * kv_tile, kv_tile)
                k_t = k_s[pl.ds(kr, kv_tile), pl.ds(qk_off, dk)]
                v_t = v_s[pl.ds(kr, kv_tile), pl.ds(v_off, dv)]
                s = lax.dot_general(q_h, k_t, (((1,), (1,)), ((), ())),
                                    preferred_element_type=jnp.float32)
                m_new = jnp.maximum(m_i, jnp.max(s, axis=-1, keepdims=True))
                alpha = jnp.exp(m_i - m_new)
                p = jnp.exp(s - m_new)
                l_new = alpha * l_i + jnp.sum(p, axis=-1, keepdims=True)
                acc_new = alpha * acc + jnp.dot(
                    p.astype(jnp.bfloat16), v_t,
                    preferred_element_type=jnp.float32)
                return m_new, l_new, acc_new

            m0 = jnp.full((n, 1), -jnp.inf, dtype=jnp.float32)
            l0 = jnp.zeros((n, 1), dtype=jnp.float32)
            a0 = jnp.zeros((n, dv), dtype=jnp.float32)
            _, l_f, acc_f = lax.fori_loop(0, n // kv_tile, body, (m0, l0, a0))
            out = acc_f * pl.reciprocal(l_f, approx=True)

        # Direct per-head store into the final-layout output block.
        # TODO(synk): pad dk/dv to multiples of 128 so these slices/stores are
        # fully lane-aligned (vst instead of vst.msk) for production shapes.
        o_ref[b, :, pl.ds(v_off, dv)] = out.astype(o_ref.dtype)

    for b in range(b_tile):                        # b_tile is small and static
        if unroll_heads:
            for h in range(num_heads):             # static slices for small nh
                one_head(b, h * dk, h * dv)
        else:
            # Large head counts: a real loop bounds liveness to one head's
            # intermediates (requires dk/dv multiples of 128 -> aligned slices).
            @pl.loop(0, num_heads)
            def _(h, b=b):
                one_head(b, pl.multiple_of(h * dk, 128),
                         pl.multiple_of(h * dv, 128))


# ----------------------------------------------------------------------------
# Wrapper
# ----------------------------------------------------------------------------
def prepare_mhsa_weights(wq, wk, wv, num_heads):
    """PyTorch nn.Linear layout (dim_out, dim_in), bias=False -> kernel layout.

    Transpose to (dim_in, dim_out), cast to bf16 and fold the softmax scale
    1/sqrt(dk) into wq. Do this ONCE at parameter-load time, not per call.
    """
    dk = wq.shape[0] // num_heads
    norm_fact = 1.0 / sqrt(dk)
    wq_t = (wq.T * norm_fact).astype(jnp.bfloat16)
    wk_t = wk.T.astype(jnp.bfloat16)
    wv_t = wv.T.astype(jnp.bfloat16)
    return wq_t, wk_t, wv_t


def _pick_b_tile(batch, n, dmax):
    """Batch several elements per grid step when the working set is tiny."""
    for cand in range(min(batch, 8), 0, -1):
        if batch % cand == 0 and cand * n * dmax * 4 <= (2 << 20):
            return cand
    return 1


def _auto_kv_tile(n):
    """Switch to the online-softmax KV-tile path once (n,n) f32 gets large."""
    if n * n * 4 <= (8 << 20):
        return None
    for t in (512, 256, 128):
        if n % t == 0:
            return t
    # TODO(synk): pad ragged n instead of falling back to full (n, n) scores.
    return None


def multi_head_self_attention(x, wq_t, wk_t, wv_t, num_heads, *, kv_tile="auto"):
    """x: (batch, n, dim_in); wq_t/wk_t/wv_t from prepare_mhsa_weights().
    Returns (batch, n, dim_v) in x.dtype."""
    batch, n, dim_in = x.shape
    dim_k = wq_t.shape[1]
    dim_v = wv_t.shape[1]
    assert wq_t.shape[0] == dim_in and wk_t.shape == (dim_in, dim_k)
    assert wv_t.shape[0] == dim_in
    assert dim_k % num_heads == 0 and dim_v % num_heads == 0
    nh = num_heads
    dk = dim_k // nh
    dv = dim_v // nh
    out_dtype = x.dtype

    if isinstance(kv_tile, str) and kv_tile == "auto":
        kv_tile = _auto_kv_tile(n)
    if kv_tile is not None:
        assert n % kv_tile == 0, "kv_tile must divide the sequence length"

    unroll_heads = (nh <= 8) or (dk % 128 != 0) or (dv % 128 != 0)
    b_tile = _pick_b_tile(batch, n, max(dim_in, dim_k, dim_v))
    rows = b_tile * n

    kernel = functools.partial(
        _mhsa_kernel, b_tile=b_tile, n=n, num_heads=nh, dk=dk, dv=dv,
        kv_tile=kv_tile, unroll_heads=unroll_heads)

    # ---- VMEM budget (explicit scoped limit; default 16/32 MiB is too small
    # at realistic shapes) -----------------------------------------------------
    itemsize_x = x.dtype.itemsize
    itemsize_o = jnp.dtype(out_dtype).itemsize
    score_cols = kv_tile if kv_tile is not None else n
    vmem_need = (
        b_tile * n * dim_in * itemsize_x * 2          # x block, double-buffered
        + dim_in * (2 * dim_k + dim_v) * 2 * 2        # bf16 weights, double-buffered
        + b_tile * n * dim_v * itemsize_o * 2         # out block, double-buffered
        + rows * (2 * dim_k + dim_v) * (2 + 4)        # q/k/v scratch + f32 temps
        + 2 * n * score_cols * 4                      # per-head s and p (f32)
        + 2 * n * dv * 4                              # PV accumulator / head out
    )
    try:
        phys_vmem = int(pltpu.get_tpu_info().vmem_capacity_bytes)
    except Exception:
        phys_vmem = 64 << 20                          # conservative (v7x per-TC)
    vmem_limit = int(min(max(int(vmem_need * 1.5) + (4 << 20), 32 << 20),
                         int(phys_vmem * 0.9)))

    flops = (2 * batch * n * dim_in * (2 * dim_k + dim_v)   # projections
             + 2 * batch * nh * n * n * (dk + dv))          # QK^T + PV
    bytes_accessed = (batch * n * dim_in * itemsize_x       # x (HBM, native dtype)
                      + dim_in * (2 * dim_k + dim_v) * 2    # bf16 weights
                      + batch * n * dim_v * itemsize_o)     # output

    out = pl.pallas_call(
        kernel,
        out_shape=jax.ShapeDtypeStruct((batch, n, dim_v), out_dtype),
        grid_spec=pltpu.PrefetchScalarGridSpec(
            num_scalar_prefetch=0,
            grid=(batch // b_tile,),
            in_specs=[
                pl.BlockSpec((b_tile, n, dim_in), lambda b: (b, 0, 0)),
                # TODO(synk): pipeline_mode=pl.Buffered(1) on the weight specs
                # (constant index_map -> fetched once) to halve weight VMEM.
                pl.BlockSpec((dim_in, dim_k), lambda b: (0, 0)),
                pl.BlockSpec((dim_in, dim_k), lambda b: (0, 0)),
                pl.BlockSpec((dim_in, dim_v), lambda b: (0, 0)),
            ],
            out_specs=pl.BlockSpec((b_tile, n, dim_v), lambda b: (b, 0, 0)),
            scratch_shapes=[
                pltpu.VMEM((rows, dim_k), jnp.bfloat16),   # q
                pltpu.VMEM((rows, dim_k), jnp.bfloat16),   # k
                pltpu.VMEM((rows, dim_v), jnp.bfloat16),   # v
            ],
        ),
        # TODO(synk): add a second "parallel" grid axis (q-tiles or heads) so
        # both v7x TensorCores stay busy when batch == 1.
        compiler_params=pltpu.CompilerParams(
            dimension_semantics=("parallel",),
            vmem_limit_bytes=vmem_limit),
        cost_estimate=pl.CostEstimate(
            flops=int(flops),
            transcendentals=int(batch * nh * n * n),
            bytes_accessed=int(bytes_accessed)),
    )(x, wq_t, wk_t, wv_t)
    return out


# ----------------------------------------------------------------------------
# Pure-JAX reference (matches the PyTorch module, f32)
# ----------------------------------------------------------------------------
def _reference(x, wq, wk, wv, num_heads):
    batch, n, dim_in = x.shape
    dim_k, dim_v = wq.shape[0], wv.shape[0]
    nh = num_heads
    dk, dv = dim_k // nh, dim_v // nh
    q = (x @ wq.T).reshape(batch, n, nh, dk).transpose(0, 2, 1, 3)
    k = (x @ wk.T).reshape(batch, n, nh, dk).transpose(0, 2, 1, 3)
    v = (x @ wv.T).reshape(batch, n, nh, dv).transpose(0, 2, 1, 3)
    dist = jnp.einsum("bhqd,bhkd->bhqk", q, k) / sqrt(dk)
    dist = jax.nn.softmax(dist, axis=-1)
    att = jnp.einsum("bhqk,bhkd->bhqd", dist, v)
    return att.transpose(0, 2, 1, 3).reshape(batch, n, dim_v)


if __name__ == "__main__":
    def run_case(batch, n, dim_in, dim_k, dim_v, num_heads, kv_tile, key):
        kx, kq, kk, kv = jax.random.split(key, 4)
        x = jax.random.normal(kx, (batch, n, dim_in), dtype=jnp.float32)
        # Deterministic "Linear" weights in PyTorch layout (dim_out, dim_in).
        wq = jax.random.normal(kq, (dim_k, dim_in), dtype=jnp.float32) * 0.1
        wk = jax.random.normal(kk, (dim_k, dim_in), dtype=jnp.float32) * 0.1
        wv = jax.random.normal(kv, (dim_v, dim_in), dtype=jnp.float32) * 0.1

        wq_t, wk_t, wv_t = prepare_mhsa_weights(wq, wk, wv, num_heads)
        out = multi_head_self_attention(x, wq_t, wk_t, wv_t, num_heads,
                                        kv_tile=kv_tile)
        out = jax.block_until_ready(out)

        ref = _reference(x, wq, wk, wv, num_heads)
        assert out.shape == (batch, n, dim_v)
        # bf16 matmul inputs + approx reciprocal (softmax rows do not sum to
        # exactly 1) -> relaxed tolerance vs. the f32 reference.
        assert jnp.allclose(out, ref, atol=5e-2, rtol=5e-2), (
            float(jnp.max(jnp.abs(out - ref))))

    key = jax.random.PRNGKey(0)
    k1, k2 = jax.random.split(key)
    # Small shapes consistent with the module's forward: full-score path,
    # two batch elements fused per grid step (B_TILE=2).
    run_case(batch=2, n=8, dim_in=32, dim_k=32, dim_v=32, num_heads=2,
             kv_tile="auto", key=k1)
    # Longer sequence exercising the flash-style KV-tile (online softmax) path.
    run_case(batch=1, n=256, dim_in=64, dim_k=64, dim_v=64, num_heads=2,
             kv_tile=128, key=k2)

    print("KERNEL_OK")
</pallas_src>

<mosaic_0001>
module attributes {stable_mosaic.version = 11 : i64} {
  func.func @_mhsa_kernel(%arg0: i32, %arg1: memref<2x8x32xf32, #tpu.memory_space<vmem>>, %arg2: memref<32x32xbf16, #tpu.memory_space<vmem>>, %arg3: memref<32x32xbf16, #tpu.memory_space<vmem>>, %arg4: memref<32x32xbf16, #tpu.memory_space<vmem>>, %arg5: memref<2x8x32xf32, #tpu.memory_space<vmem>>, %arg6: memref<16x32xbf16, #tpu.memory_space<vmem>>, %arg7: memref<16x32xbf16, #tpu.memory_space<vmem>>, %arg8: memref<16x32xbf16, #tpu.memory_space<vmem>>) attributes {dimension_semantics = [#tpu.dimension_semantics<parallel>], iteration_bounds = array<i64: 1>, scalar_prefetch = 0 : i64, scratch_operands = 3 : i64, tpu.core_type = #tpu.core_type<tc>, window_params = [{transform_indices = @transform_0, window_bounds = array<i64: 2, 8, 32>}, {pipeline_mode = #tpu.pipeline_mode<synchronous>, transform_indices = @transform_1, window_bounds = array<i64: 32, 32>}, {pipeline_mode = #tpu.pipeline_mode<synchronous>, transform_indices = @transform_2, window_bounds = array<i64: 32, 32>}, {pipeline_mode = #tpu.pipeline_mode<synchronous>, transform_indices = @transform_3, window_bounds = array<i64: 32, 32>}, {transform_indices = @transform_4, window_bounds = array<i64: 2, 8, 32>}]} {
    %c0 = arith.constant 0 : index
    %c0_0 = arith.constant 0 : index
    %c0_1 = arith.constant 0 : index
    %0 = vector.load %arg1[%c0, %c0_0, %c0_1] : memref<2x8x32xf32, #tpu.memory_space<vmem>>, vector<2x8x32xf32>
    %1 = vector.shape_cast %0 : vector<2x8x32xf32> to vector<16x32xf32>
    %2 = arith.truncf %1 : vector<16x32xf32> to vector<16x32xbf16>
    %c0_2 = arith.constant 0 : index
    %c0_3 = arith.constant 0 : index
    %3 = vector.load %arg2[%c0_2, %c0_3] : memref<32x32xbf16, #tpu.memory_space<vmem>>, vector<32x32xbf16>
    %cst = arith.constant dense<0.000000e+00> : vector<16x32xf32>
    %4 = tpu.matmul %2, %3, %cst {dimension_numbers = #tpu.dot_dimension_numbers<[1], [0], [0], [1], [0, 0, 1, 1], [], []>} : vector<16x32xbf16>, vector<32x32xbf16>, vector<16x32xf32> -> vector<16x32xf32>
    %5 = arith.truncf %4 : vector<16x32xf32> to vector<16x32xbf16>
    %c0_4 = arith.constant 0 : index
    %c0_5 = arith.constant 0 : index
    %6 = vector.load %arg6[%c0_4, %c0_5] : memref<16x32xbf16, #tpu.memory_space<vmem>>, vector<16x32xbf16>
    tpu.vector_store %arg6[%c0_4, %c0_5], %5 {strides = array<i32>} : memref<16x32xbf16, #tpu.memory_space<vmem>>, vector<16x32xbf16>,
    %c0_6 = arith.constant 0 : index
    %c0_7 = arith.constant 0 : index
    %7 = vector.load %arg3[%c0_6, %c0_7] : memref<32x32xbf16, #tpu.memory_space<vmem>>, vector<32x32xbf16>
    %cst_8 = arith.constant dense<0.000000e+00> : vector<16x32xf32>
    %8 = tpu.matmul %2, %7, %cst_8 {dimension_numbers = #tpu.dot_dimension_numbers<[1], [0], [0], [1], [0, 0, 1, 1], [], []>} : vector<16x32xbf16>, vector<32x32xbf16>, vector<16x32xf32> -> vector<16x32xf32>
    %9 = arith.truncf %8 : vector<16x32xf32> to vector<16x32xbf16>
    %c0_9 = arith.constant 0 : index
    %c0_10 = arith.constant 0 : index
    %10 = vector.load %arg7[%c0_9, %c0_10] : memref<16x32xbf16, #tpu.memory_space<vmem>>, vector<16x32xbf16>
    tpu.vector_store %arg7[%c0_9, %c0_10], %9 {strides = array<i32>} : memref<16x32xbf16, #tpu.memory_space<vmem>>, vector<16x32xbf16>,
    %c0_11 = arith.constant 0 : index
    %c0_12 = arith.constant 0 : index
    %11 = vector.load %arg4[%c0_11, %c0_12] : memref<32x32xbf16, #tpu.memory_space<vmem>>, vector<32x32xbf16>
    %cst_13 = arith.constant dense<0.000000e+00> : vector<16x32xf32>
    %12 = tpu.matmul %2, %11, %cst_13 {dimension_numbers = #tpu.dot_dimension_numbers<[1], [0], [0], [1], [0, 0, 1, 1], [], []>} : vector<16x32xbf16>, vector<32x32xbf16>, vector<16x32xf32> -> vector<16x32xf32>
    %13 = arith.truncf %12 : vector<16x32xf32> to vector<16x32xbf16>
    %c0_14 = arith.constant 0 : index
    %c0_15 = arith.constant 0 : index
    %14 = vector.load %arg8[%c0_14, %c0_15] : memref<16x32xbf16, #tpu.memory_space<vmem>>, vector<16x32xbf16>
    tpu.vector_store %arg8[%c0_14, %c0_15], %13 {strides = array<i32>} : memref<16x32xbf16, #tpu.memory_space<vmem>>, vector<16x32xbf16>,
    %c0_16 = arith.constant 0 : index
    %c0_17 = arith.constant 0 : index
    %15 = vector.load %arg6[%c0_16, %c0_17] : memref<16x32xbf16, #tpu.memory_space<vmem>>, vector<8x16xbf16>
    %c0_18 = arith.constant 0 : index
    %c0_19 = arith.constant 0 : index
    %16 = vector.load %arg7[%c0_18, %c0_19] : memref<16x32xbf16, #tpu.memory_space<vmem>>, vector<8x16xbf16>
    %c0_20 = arith.constant 0 : index
    %c0_21 = arith.constant 0 : index
    %17 = vector.load %arg8[%c0_20, %c0_21] : memref<16x32xbf16, #tpu.memory_space<vmem>>, vector<8x16xbf16>
    %cst_22 = arith.constant dense<0.000000e+00> : vector<8x8xf32>
    %18 = tpu.matmul %15, %16, %cst_22 {dimension_numbers = #tpu.dot_dimension_numbers<[1], [1], [0], [0], [0, 0, 1, 0], [], []>} : vector<8x16xbf16>, vector<8x16xbf16>, vector<8x8xf32> -> vector<8x8xf32>
    %cst_23 = arith.constant dense<0xFF800000> : vector<8xf32>
    %19 = vector.multi_reduction <maximumf>, %18, %cst_23 [1] : vector<8x8xf32> to vector<8xf32>
    %20 = vector.shape_cast %19 : vector<8xf32> to vector<8x1xf32>
    %21 = vector.broadcast %20 : vector<8x1xf32> to vector<8x8xf32>
    %22 = arith.subf %18, %21 : vector<8x8xf32>
    %23 = math.exp %22 : vector<8x8xf32>
    %cst_24 = arith.constant dense<0.000000e+00> : vector<8xf32>
    %24 = vector.multi_reduction <add>, %23, %cst_24 [1] : vector<8x8xf32> to vector<8xf32>
    %25 = vector.shape_cast %24 : vector<8xf32> to vector<8x1xf32>
    %26 = arith.truncf %23 : vector<8x8xf32> to vector<8x8xbf16>
    %cst_25 = arith.constant dense<0.000000e+00> : vector<8x16xf32>
    %27 = tpu.matmul %26, %17, %cst_25 {dimension_numbers = #tpu.dot_dimension_numbers<[1], [0], [0], [1], [0, 0, 1, 1], [], []>} : vector<8x8xbf16>, vector<8x16xbf16>, vector<8x16xf32> -> vector<8x16xf32>
    %28 = tpu.reciprocal %25 {approx = true} : vector<8x1xf32> -> vector<8x1xf32>
    %29 = vector.broadcast %28 : vector<8x1xf32> to vector<8x16xf32>
    %30 = arith.mulf %27, %29 : vector<8x16xf32>
    %c0_26 = arith.constant 0 : index
    %c0_27 = arith.constant 0 : index
    %c0_28 = arith.constant 0 : index
    %31 = vector.load %arg5[%c0_26, %c0_27, %c0_28] : memref<2x8x32xf32, #tpu.memory_space<vmem>>, vector<1x8x16xf32>
    %32 = vector.shape_cast %31 : vector<1x8x16xf32> to vector<8x16xf32>
    %33 = vector.shape_cast %30 : vector<8x16xf32> to vector<1x8x16xf32>
    tpu.vector_store %arg5[%c0_26, %c0_27, %c0_28], %33 {strides = array<i32>} : memref<2x8x32xf32, #tpu.memory_space<vmem>>, vector<1x8x16xf32>,
    %c0_29 = arith.constant 0 : index
    %c16 = arith.constant 16 : index
    %34 = vector.load %arg6[%c0_29, %c16] : memref<16x32xbf16, #tpu.memory_space<vmem>>, vector<8x16xbf16>
    %c0_30 = arith.constant 0 : index
    %c16_31 = arith.constant 16 : index
    %35 = vector.load %arg7[%c0_30, %c16_31] : memref<16x32xbf16, #tpu.memory_space<vmem>>, vector<8x16xbf16>
    %c0_32 = arith.constant 0 : index
    %c16_33 = arith.constant 16 : index
    %36 = vector.load %arg8[%c0_32, %c16_33] : memref<16x32xbf16, #tpu.memory_space<vmem>>, vector<8x16xbf16>
    %cst_34 = arith.constant dense<0.000000e+00> : vector<8x8xf32>
    %37 = tpu.matmul %34, %35, %cst_34 {dimension_numbers = #tpu.dot_dimension_numbers<[1], [1], [0], [0], [0, 0, 1, 0], [], []>} : vector<8x16xbf16>, vector<8x16xbf16>, vector<8x8xf32> -> vector<8x8xf32>
    %cst_35 = arith.constant dense<0xFF800000> : vector<8xf32>
    %38 = vector.multi_reduction <maximumf>, %37, %cst_35 [1] : vector<8x8xf32> to vector<8xf32>
    %39 = vector.shape_cast %38 : vector<8xf32> to vector<8x1xf32>
    %40 = vector.broadcast %39 : vector<8x1xf32> to vector<8x8xf32>
    %41 = arith.subf %37, %40 : vector<8x8xf32>
    %42 = math.exp %41 : vector<8x8xf32>
    %cst_36 = arith.constant dense<0.000000e+00> : vector<8xf32>
    %43 = vector.multi_reduction <add>, %42, %cst_36 [1] : vector<8x8xf32> to vector<8xf32>
    %44 = vector.shape_cast %43 : vector<8xf32> to vector<8x1xf32>
    %45 = arith.truncf %42 : vector<8x8xf32> to vector<8x8xbf16>
    %cst_37 = arith.constant dense<0.000000e+00> : vector<8x16xf32>
    %46 = tpu.matmul %45, %36, %cst_37 {dimension_numbers = #tpu.dot_dimension_numbers<[1], [0], [0], [1], [0, 0, 1, 1], [], []>} : vector<8x8xbf16>, vector<8x16xbf16>, vector<8x16xf32> -> vector<8x16xf32>
    %47 = tpu.reciprocal %44 {approx = true} : vector<8x1xf32> -> vector<8x1xf32>
    %48 = vector.broadcast %47 : vector<8x1xf32> to vector<8x16xf32>
    %49 = arith.mulf %46, %48 : vector<8x16xf32>
    %c0_38 = arith.constant 0 : index
    %c0_39 = arith.constant 0 : index
    %c16_40 = arith.constant 16 : index
    %50 = vector.load %arg5[%c0_38, %c0_39, %c16_40] : memref<2x8x32xf32, #tpu.memory_space<vmem>>, vector<1x8x16xf32>
    %51 = vector.shape_cast %50 : vector<1x8x16xf32> to vector<8x16xf32>
    %52 = vector.shape_cast %49 : vector<8x16xf32> to vector<1x8x16xf32>
    tpu.vector_store %arg5[%c0_38, %c0_39, %c16_40], %52 {strides = array<i32>} : memref<2x8x32xf32, #tpu.memory_space<vmem>>, vector<1x8x16xf32>,
    %c8 = arith.constant 8 : index
    %c0_41 = arith.constant 0 : index
    %53 = vector.load %arg6[%c8, %c0_41] : memref<16x32xbf16, #tpu.memory_space<vmem>>, vector<8x16xbf16>
    %c8_42 = arith.constant 8 : index
    %c0_43 = arith.constant 0 : index
    %54 = vector.load %arg7[%c8_42, %c0_43] : memref<16x32xbf16, #tpu.memory_space<vmem>>, vector<8x16xbf16>
    %c8_44 = arith.constant 8 : index
    %c0_45 = arith.constant 0 : index
    %55 = vector.load %arg8[%c8_44, %c0_45] : memref<16x32xbf16, #tpu.memory_space<vmem>>, vector<8x16xbf16>
    %cst_46 = arith.constant dense<0.000000e+00> : vector<8x8xf32>
    %56 = tpu.matmul %53, %54, %cst_46 {dimension_numbers = #tpu.dot_dimension_numbers<[1], [1], [0], [0], [0, 0, 1, 0], [], []>} : vector<8x16xbf16>, vector<8x16xbf16>, vector<8x8xf32> -> vector<8x8xf32>
    %cst_47 = arith.constant dense<0xFF800000> : vector<8xf32>
    %57 = vector.multi_reduction <maximumf>, %56, %cst_47 [1] : vector<8x8xf32> to vector<8xf32>
    %58 = vector.shape_cast %57 : vector<8xf32> to vector<8x1xf32>
    %59 = vector.broadcast %58 : vector<8x1xf32> to vector<8x8xf32>
    %60 = arith.subf %56, %59 : vector<8x8xf32>
    %61 = math.exp %60 : vector<8x8xf32>
    %cst_48 = arith.constant dense<0.000000e+00> : vector<8xf32>
    %62 = vector.multi_reduction <add>, %61, %cst_48 [1] : vector<8x8xf32> to vector<8xf32>
    %63 = vector.shape_cast %62 : vector<8xf32> to vector<8x1xf32>
    %64 = arith.truncf %61 : vector<8x8xf32> to vector<8x8xbf16>
    %cst_49 = arith.constant dense<0.000000e+00> : vector<8x16xf32>
    %65 = tpu.matmul %64, %55, %cst_49 {dimension_numbers = #tpu.dot_dimension_numbers<[1], [0], [0], [1], [0, 0, 1, 1], [], []>} : vector<8x8xbf16>, vector<8x16xbf16>, vector<8x16xf32> -> vector<8x16xf32>
    %66 = tpu.reciprocal %63 {approx = true} : vector<8x1xf32> -> vector<8x1xf32>
    %67 = vector.broadcast %66 : vector<8x1xf32> to vector<8x16xf32>
    %68 = arith.mulf %65, %67 : vector<8x16xf32>
    %c1 = arith.constant 1 : index
    %c0_50 = arith.constant 0 : index
    %c0_51 = arith.constant 0 : index
    %69 = vector.load %arg5[%c1, %c0_50, %c0_51] : memref<2x8x32xf32, #tpu.memory_space<vmem>>, vector<1x8x16xf32>
    %70 = vector.shape_cast %69 : vector<1x8x16xf32> to vector<8x16xf32>
    %71 = vector.shape_cast %68 : vector<8x16xf32> to vector<1x8x16xf32>
    tpu.vector_store %arg5[%c1, %c0_50, %c0_51], %71 {strides = array<i32>} : memref<2x8x32xf32, #tpu.memory_space<vmem>>, vector<1x8x16xf32>,
    %c8_52 = arith.constant 8 : index
    %c16_53 = arith.constant 16 : index
    %72 = vector.load %arg6[%c8_52, %c16_53] : memref<16x32xbf16, #tpu.memory_space<vmem>>, vector<8x16xbf16>
    %c8_54 = arith.constant 8 : index
    %c16_55 = arith.constant 16 : index
    %73 = vector.load %arg7[%c8_54, %c16_55] : memref<16x32xbf16, #tpu.memory_space<vmem>>, vector<8x16xbf16>
    %c8_56 = arith.constant 8 : index
    %c16_57 = arith.constant 16 : index
    %74 = vector.load %arg8[%c8_56, %c16_57] : memref<16x32xbf16, #tpu.memory_space<vmem>>, vector<8x16xbf16>
    %cst_58 = arith.constant dense<0.000000e+00> : vector<8x8xf32>
    %75 = tpu.matmul %72, %73, %cst_58 {dimension_numbers = #tpu.dot_dimension_numbers<[1], [1], [0], [0], [0, 0, 1, 0], [], []>} : vector<8x16xbf16>, vector<8x16xbf16>, vector<8x8xf32> -> vector<8x8xf32>
    %cst_59 = arith.constant dense<0xFF800000> : vector<8xf32>
    %76 = vector.multi_reduction <maximumf>, %75, %cst_59 [1] : vector<8x8xf32> to vector<8xf32>
    %77 = vector.shape_cast %76 : vector<8xf32> to vector<8x1xf32>
    %78 = vector.broadcast %77 : vector<8x1xf32> to vector<8x8xf32>
    %79 = arith.subf %75, %78 : vector<8x8xf32>
    %80 = math.exp %79 : vector<8x8xf32>
    %cst_60 = arith.constant dense<0.000000e+00> : vector<8xf32>
    %81 = vector.multi_reduction <add>, %80, %cst_60 [1] : vector<8x8xf32> to vector<8xf32>
    %82 = vector.shape_cast %81 : vector<8xf32> to vector<8x1xf32>
    %83 = arith.truncf %80 : vector<8x8xf32> to vector<8x8xbf16>
    %cst_61 = arith.constant dense<0.000000e+00> : vector<8x16xf32>
    %84 = tpu.matmul %83, %74, %cst_61 {dimension_numbers = #tpu.dot_dimension_numbers<[1], [0], [0], [1], [0, 0, 1, 1], [], []>} : vector<8x8xbf16>, vector<8x16xbf16>, vector<8x16xf32> -> vector<8x16xf32>
    %85 = tpu.reciprocal %82 {approx = true} : vector<8x1xf32> -> vector<8x1xf32>
    %86 = vector.broadcast %85 : vector<8x1xf32> to vector<8x16xf32>
    %87 = arith.mulf %84, %86 : vector<8x16xf32>
    %c1_62 = arith.constant 1 : index
    %c0_63 = arith.constant 0 : index
    %c16_64 = arith.constant 16 : index
    %88 = vector.load %arg5[%c1_62, %c0_63, %c16_64] : memref<2x8x32xf32, #tpu.memory_space<vmem>>, vector<1x8x16xf32>
    %89 = vector.shape_cast %88 : vector<1x8x16xf32> to vector<8x16xf32>
    %90 = vector.shape_cast %87 : vector<8x16xf32> to vector<1x8x16xf32>
    tpu.vector_store %arg5[%c1_62, %c0_63, %c16_64], %90 {strides = array<i32>} : memref<2x8x32xf32, #tpu.memory_space<vmem>>, vector<1x8x16xf32>,
    return
  }
  func.func @transform_0(%arg0: i32) -> (i32, i32, i32) {
    %c0_i32 = arith.constant 0 : i32
    %c0_i32_0 = arith.constant 0 : i32
    %c0_i32_1 = arith.constant 0 : i32
    return %arg0, %c0_i32, %c0_i32_0 : i32, i32, i32
  }
  func.func @transform_1(%arg0: i32) -> (i32, i32) {
    %c0_i32 = arith.constant 0 : i32
    %c0_i32_0 = arith.constant 0 : i32
    %c0_i32_1 = arith.constant 0 : i32
    return %c0_i32, %c0_i32_0 : i32, i32
  }
  func.func @transform_2(%arg0: i32) -> (i32, i32) {
    %c0_i32 = arith.constant 0 : i32
    %c0_i32_0 = arith.constant 0 : i32
    %c0_i32_1 = arith.constant 0 : i32
    return %c0_i32, %c0_i32_0 : i32, i32
  }
  func.func @transform_3(%arg0: i32) -> (i32, i32) {
    %c0_i32 = arith.constant 0 : i32
    %c0_i32_0 = arith.constant 0 : i32
    %c0_i32_1 = arith.constant 0 : i32
    return %c0_i32, %c0_i32_0 : i32, i32
  }
  func.func @transform_4(%arg0: i32) -> (i32, i32, i32) {
    %c0_i32 = arith.constant 0 : i32
    %c0_i32_0 = arith.constant 0 : i32
    %c0_i32_1 = arith.constant 0 : i32
    return %arg0, %c0_i32, %c0_i32_0 : i32, i32, i32
  }
}

</mosaic_0001>

<llo_original>
// kernel: tpu_custom_call.1
$region0: #{tpu_custom_call.1}
  #allocation0 [shape = 'u32[]', space=smem, size = 0x4, offset = 0x4, fixed_abs, tag = 'smem constant byte address 0x4 - core index']
  #allocation1 [shape = 'u32[144,128]{1,0:T(1,128)}', space=vmem, size = 0x12000, scoped, tag = 'internal scratch']
  #allocation2 [shape = 'bf16[16,32]{1,0:T(8,128)(2,1)}', space=vmem, size = 0x1000, scoped, tag = 'scratch operand']
  #allocation3 [shape = 'bf16[16,32]{1,0:T(8,128)(2,1)}', space=vmem, size = 0x1000, scoped, tag = 'scratch operand']
  #allocation4 [shape = 'bf16[16,32]{1,0:T(8,128)(2,1)}', space=vmem, size = 0x1000, scoped, tag = 'scratch operand']
  %s0 = inlined_call_operand.hbm [shape: f32[2,8,32], index: 0, kind: input, shape index: {}]
  %s1 = inlined_call_operand.hbm [shape: bf16[32,32], index: 1, kind: input, shape index: {}]
  %s2 = inlined_call_operand.hbm [shape: bf16[32,32], index: 2, kind: input, shape index: {}]
  %s3 = inlined_call_operand.hbm [shape: bf16[32,32], index: 3, kind: input, shape index: {}]
  %s4 = inlined_call_operand.hbm [shape: f32[2,8,32], index: 4, kind: output, shape index: {}]
  %s5 = sld [smem:[#allocation0]]
  $region42: #{tpu_custom_call.1} parent=0
    _
  %s7 = ssub.s32 1, %s5
  %s8 = scalar_select 0, %s7, %s5
  $region1: #{tpu_custom_call.1} parent=0
    #allocation5 [shape = 'u8[8192]{0}', space=vmem, size = 0x2000, scoped, tag = 'input window, operand 0, single buffered']
    #allocation6 [shape = 's32[1]{0}', space=sflag, size = 0x4, scoped, tag = 'scoped memory for tpu_custom_call.1']
    #allocation7 [shape = 's32[1]{0}', space=sflag, size = 0x4, scoped, tag = 'scoped memory for tpu_custom_call.1']
    #allocation8 [shape = 'u8[8192]{0}', space=vmem, size = 0x2000, scoped, tag = 'input window, operand 1, single buffered']
    #allocation9 [shape = 's32[1]{0}', space=sflag, size = 0x4, scoped, tag = 'scoped memory for tpu_custom_call.1']
    #allocation10 [shape = 'u8[8192]{0}', space=vmem, size = 0x2000, scoped, tag = 'input window, operand 2, single buffered']
    #allocation11 [shape = 'u8[8192]{0}', space=vmem, size = 0x2000, scoped, tag = 'input window, operand 3, single buffered']
    #allocation12 [shape = 's32[1]{0}', space=sflag, size = 0x4, scoped, tag = 'scoped memory for tpu_custom_call.1']
    #allocation13 [shape = 'u8[8192]{0}', space=vmem, size = 0x2000, scoped, tag = 'output window, operand 0, single buffered']
    %9 = vsyncpa [#allocation6], 0
    %10 = vsyncpa [#allocation9], 0
    %11 = vsyncpa [#allocation12], 0
    %12 = vsyncpa [#allocation7], 0
    // Predicated region
    $region2: #{tpu_custom_call.1} parent=1 // pred_check
      _
    $region3: #{tpu_custom_call.1} parent=1 // pred_check_branch
      %14 = sbr.rel (0) target = $region5
    $region4: #{tpu_custom_call.1} parent=1 // pred_region
      %s16 = ssub.s32 256, 256
      %17 = vsyncadd [#allocation6], %s16
      %s18 = sshll.u32 [#allocation5], 4
      %s19 = int_to_ptr.vmem [resolvable:$true] %s18
      %24 = dma.hbm_to_vmem [thread:$0]  %s0, 256, %s19, [#allocation6], 128, 128, 8
    $region5: #{tpu_custom_call.1} parent=1 // pred_fallthru
      _
    // Predicated region
    $region6: #{tpu_custom_call.1} parent=1 // pred_check
      _
    $region7: #{tpu_custom_call.1} parent=1 // pred_check_branch
      %26 = sbr.rel (0) target = $region9
    $region8: #{tpu_custom_call.1} parent=1 // pred_region
      %s28 = ssub.s32 256, 256
      %29 = vsyncadd [#allocation9], %s28
      %s30 = sshll.u32 [#allocation8], 4
      %s31 = int_to_ptr.vmem [resolvable:$true] %s30
      %36 = dma.hbm_to_vmem [thread:$0]  %s1, 256, %s31, [#allocation9], 64, 64, 4
    $region9: #{tpu_custom_call.1} parent=1 // pred_fallthru
      _
    // Predicated region
    $region10: #{tpu_custom_call.1} parent=1 // pred_check
      _
    $region11: #{tpu_custom_call.1} parent=1 // pred_check_branch
      %38 = sbr.rel (0) target = $region13
    $region12: #{tpu_custom_call.1} parent=1 // pred_region
      %s40 = ssub.s32 256, 256
      %41 = vsyncadd [#allocation9], %s40
      %s42 = sshll.u32 [#allocation10], 4
      %s43 = int_to_ptr.vmem [resolvable:$true] %s42
      %48 = dma.hbm_to_vmem [thread:$0]  %s2, 256, %s43, [#allocation9], 64, 64, 4
    $region13: #{tpu_custom_call.1} parent=1 // pred_fallthru
      _
    // Predicated region
    $region14: #{tpu_custom_call.1} parent=1 // pred_check
      _
    $region15: #{tpu_custom_call.1} parent=1 // pred_check_branch
      %50 = sbr.rel (0) target = $region17
    $region16: #{tpu_custom_call.1} parent=1 // pred_region
      %s52 = ssub.s32 256, 256
      %53 = vsyncadd [#allocation12], %s52
      %s54 = sshll.u32 [#allocation11], 4
      %s55 = int_to_ptr.vmem [resolvable:$true] %s54
      %60 = dma.hbm_to_vmem [thread:$0]  %s3, 256, %s55, [#allocation12], 64, 64, 4
    $region17: #{tpu_custom_call.1} parent=1 // pred_fallthru
      _
    // Predicated region
    $region18: #{tpu_custom_call.1} parent=1 // pred_check
      _
    $region19: #{tpu_custom_call.1} parent=1 // pred_check_branch
      %62 = sbr.rel (0) target = $region21
    $region20: #{tpu_custom_call.1} parent=1 // pred_region
      %63 = dma.done [#allocation6], 256
    $region21: #{tpu_custom_call.1} parent=1 // pred_fallthru
      _
    // Predicated region
    $region22: #{tpu_custom_call.1} parent=1 // pred_check
      _
    $region23: #{tpu_custom_call.1} parent=1 // pred_check_branch
      %65 = sbr.rel (0) target = $region25
    $region24: #{tpu_custom_call.1} parent=1 // pred_region
      %66 = dma.done [#allocation9], 256
    $region25: #{tpu_custom_call.1} parent=1 // pred_fallthru
      _
    // Predicated region
    $region26: #{tpu_custom_call.1} parent=1 // pred_check
      _
    $region27: #{tpu_custom_call.1} parent=1 // pred_check_branch
      %68 = sbr.rel (0) target = $region29
    $region28: #{tpu_custom_call.1} parent=1 // pred_region
      %69 = dma.done [#allocation9], 256
    $region29: #{tpu_custom_call.1} parent=1 // pred_fallthru
      _
    // Predicated region
    $region30: #{tpu_custom_call.1} parent=1 // pred_check
      _
    $region31: #{tpu_custom_call.1} parent=1 // pred_check_branch
      %71 = sbr.rel (0) target = $region33
    $region32: #{tpu_custom_call.1} parent=1 // pred_region
      %72 = dma.done [#allocation12], 256
    $region33: #{tpu_custom_call.1} parent=1 // pred_fallthru
      _
    %v74 = vld [vmem:[#allocation5] sm:$0xff]
    %v75 = vld [vmem:[#allocation5 + $0x8] sm:$0xff]
    %v76 = vpack.c.bf16 %v75, %v74
    %v77 = vld [vmem:[#allocation8] sm:$0xf]
    %v78 = vld [vmem:[#allocation8 + $0x4] sm:$0xf]
    %v79 = vld [vmem:[#allocation8 + $0x8] sm:$0xf]
    %v80 = vld [vmem:[#allocation8 + $0xc] sm:$0xf]
    %v85 = vunpack.c.l.b16 %v77
    %v86 = vunpack.c.l.b16 %v78
    %v87 = vunpack.c.l.b16 %v79
    %v88 = vunpack.c.l.b16 %v80
    %v89 = vpack.c.b16 %v86, %v85
    %v90 = vpack.c.b16 %v88, %v87
    %vm93 = vcmask 261120
    %v95 = vsel %vm93, %v76, 0
    %97 = vmatprep.subr.bf16.mxu0 0
    %98 = vmatpush1.bf16.msra.mxu0 0
    %99 = vmatprep.subr.bf16.mxu0 0
    %100 = vmatpush1.bf16.msra.mxu0 0
    %101 = vmatprep.subr.bf16.mxu0 0
    %102 = vmatpush1.bf16.msra.mxu0 0
    %103 = vmatprep.subr.bf16.mxu0 0
    %104 = vmatpush1.bf16.msra.mxu0 0
    %105 = vmatprep.subr.bf16.mxu0 0
    %106 = vmatpush1.bf16.msra.mxu0 0
    %107 = vmatprep.subr.bf16.mxu0 0
    %108 = vmatpush1.bf16.msra.mxu0 0
    %109 = vmatprep.subr.bf16.mxu0 0
    %110 = vmatpush1.bf16.msra.mxu0 %v90
    %111 = vmatprep.subr.bf16.mxu0 0
    %112 = vmatpush1.bf16.msra.mxu0 %v89
    %113 = vmatprep.subr.bf16.mxu0 0
    %114 = vmatpush2.bf16.msra.mxu0 0
    %115 = vmatprep.subr.bf16.mxu0 0
    %116 = vmatpush2.bf16.msra.mxu0 0
    %117 = vmatprep.subr.bf16.mxu0 0
    %118 = vmatpush2.bf16.msra.mxu0 0
    %119 = vmatprep.subr.bf16.mxu0 0
    %120 = vmatpush2.bf16.msra.mxu0 0
    %121 = vmatprep.subr.bf16.mxu0 0
    %122 = vmatpush2.bf16.msra.mxu0 0
    %123 = vmatprep.subr.bf16.mxu0 0
    %124 = vmatpush2.bf16.msra.mxu0 0
    %125 = vmatprep.subr.bf16.mxu0 0
    %126 = vmatpush2.bf16.msra.mxu0 0
    %127 = vmatprep.subr.bf16.mxu0 0
    %128 = vmatpush2.bf16.msra.mxu0 0
    %129 = vmatprep.mubr.bf16.mxu0 0
    %130 = vmatmul.mubr.bf16.gmra.mxu0 %v95
    %v131 = vpop.f32.mrf.mxu0
    %v132 = vadd.f32 0.0, %v131
    %v133 = vpop.f32.mrf.mxu0
    %v134 = vpop.f32.mrf.mxu0
    %v135 = vadd.f32 0.0, %v134
    %v136 = vpop.f32.mrf.mxu0
    %137 = vdwg.mxu0
    %v138 = vpack.c.bf16 %v135, %v132
    %v140 = vunpack.c.l.b16 %v138
    %v141 = vunpack.c.h.b16 %v138
    %v142 = vpack.c.b16 %v140, %v140
    %v143 = vpack.c.b16 %v141, %v141
    %vm146 = vcmask 257024
    %147 = vst.msk [vmem:[#allocation2] sm:$0xf] %vm146, %v142
    %148 = vst.msk [vmem:[#allocation2 + $0x4] sm:$0xf] %vm146, %v143
    %v149 = vld [vmem:[#allocation10] sm:$0xf]
    %v150 = vld [vmem:[#allocation10 + $0x4] sm:$0xf]
    %v151 = vld [vmem:[#allocation10 + $0x8] sm:$0xf]
    %v152 = vld [vmem:[#allocation10 + $0xc] sm:$0xf]
    %v157 = vunpack.c.l.b16 %v149
    %v158 = vunpack.c.l.b16 %v150
    %v159 = vunpack.c.l.b16 %v151
    %v160 = vunpack.c.l.b16 %v152
    %v161 = vpack.c.b16 %v158, %v157
    %v162 = vpack.c.b16 %v160, %v159
    %165 = vmatprep.subr.bf16.mxu0 0
    %166 = vmatpush1.bf16.msra.mxu0 0
    %167 = vmatprep.subr.bf16.mxu0 0
    %168 = vmatpush1.bf16.msra.mxu0 0
    %169 = vmatprep.subr.bf16.mxu0 0
    %170 = vmatpush1.bf16.msra.mxu0 0
    %171 = vmatprep.subr.bf16.mxu0 0
    %172 = vmatpush1.bf16.msra.mxu0 0
    %173 = vmatprep.subr.bf16.mxu0 0
    %174 = vmatpush1.bf16.msra.mxu0 0
    %175 = vmatprep.subr.bf16.mxu0 0
    %176 = vmatpush1.bf16.msra.mxu0 0
    %177 = vmatprep.subr.bf16.mxu0 0
    %178 = vmatpush1.bf16.msra.mxu0 %v162
    %179 = vmatprep.subr.bf16.mxu0 0
    %180 = vmatpush1.bf16.msra.mxu0 %v161
    %181 = vmatprep.subr.bf16.mxu0 0
    %182 = vmatpush2.bf16.msra.mxu0 0
    %183 = vmatprep.subr.bf16.mxu0 0
    %184 = vmatpush2.bf16.msra.mxu0 0
    %185 = vmatprep.subr.bf16.mxu0 0
    %186 = vmatpush2.bf16.msra.mxu0 0
    %187 = vmatprep.subr.bf16.mxu0 0
    %188 = vmatpush2.bf16.msra.mxu0 0
    %189 = vmatprep.subr.bf16.mxu0 0
    %190 = vmatpush2.bf16.msra.mxu0 0
    %191 = vmatprep.subr.bf16.mxu0 0
    %192 = vmatpush2.bf16.msra.mxu0 0
    %193 = vmatprep.subr.bf16.mxu0 0
    %194 = vmatpush2.bf16.msra.mxu0 0
    %195 = vmatprep.subr.bf16.mxu0 0
    %196 = vmatpush2.bf16.msra.mxu0 0
    %197 = vmatprep.mubr.bf16.mxu0 0
    %198 = vmatmul.mubr.bf16.gmra.mxu0 %v95
    %v199 = vpop.f32.mrf.mxu0
    %v200 = vadd.f32 0.0, %v199
    %v201 = vpop.f32.mrf.mxu0
    %v202 = vpop.f32.mrf.mxu0
    %v203 = vadd.f32 0.0, %v202
    %v204 = vpop.f32.mrf.mxu0
    %205 = vdwg.mxu0
    %v206 = vpack.c.bf16 %v203, %v200
    %v208 = vunpack.c.l.b16 %v206
    %v209 = vunpack.c.h.b16 %v206
    %v210 = vpack.c.b16 %v208, %v208
    %v211 = vpack.c.b16 %v209, %v209
    %214 = vst.msk [vmem:[#allocation3] sm:$0xf] %vm146, %v210
    %215 = vst.msk [vmem:[#allocation3 + $0x4] sm:$0xf] %vm146, %v211
    %v216 = vld [vmem:[#allocation11] sm:$0xf]
    %v217 = vld [vmem:[#allocation11 + $0x4] sm:$0xf]
    %v218 = vld [vmem:[#allocation11 + $0x8] sm:$0xf]
    %v219 = vld [vmem:[#allocation11 + $0xc] sm:$0xf]
    %v224 = vunpack.c.l.b16 %v216
    %v225 = vunpack.c.l.b16 %v217
    %v226 = vunpack.c.l.b16 %v218
    %v227 = vunpack.c.l.b16 %v219
    %v228 = vpack.c.b16 %v225, %v224
    %v229 = vpack.c.b16 %v227, %v226
    %232 = vmatprep.subr.bf16.mxu0 0
    %233 = vmatpush1.bf16.msra.mxu0 0
    %234 = vmatprep.subr.bf16.mxu0 0
    %235 = vmatpush1.bf16.msra.mxu0 0
    %236 = vmatprep.subr.bf16.mxu0 0
    %237 = vmatpush1.bf16.msra.mxu0 0
    %238 = vmatprep.subr.bf16.mxu0 0
    %239 = vmatpush1.bf16.msra.mxu0 0
    %240 = vmatprep.subr.bf16.mxu0 0
    %241 = vmatpush1.bf16.msra.mxu0 0
    %242 = vmatprep.subr.bf16.mxu0 0
    %243 = vmatpush1.bf16.msra.mxu0 0
    %244 = vmatprep.subr.bf16.mxu0 0
    %245 = vmatpush1.bf16.msra.mxu0 %v229
    %246 = vmatprep.subr.bf16.mxu0 0
    %247 = vmatpush1.bf16.msra.mxu0 %v228
    %248 = vmatprep.subr.bf16.mxu0 0
    %249 = vmatpush2.bf16.msra.mxu0 0
    %250 = vmatprep.subr.bf16.mxu0 0
    %251 = vmatpush2.bf16.msra.mxu0 0
    %252 = vmatprep.subr.bf16.mxu0 0
    %253 = vmatpush2.bf16.msra.mxu0 0
    %254 = vmatprep.subr.bf16.mxu0 0
    %255 = vmatpush2.bf16.msra.mxu0 0
    %256 = vmatprep.subr.bf16.mxu0 0
    %257 = vmatpush2.bf16.msra.mxu0 0
    %258 = vmatprep.subr.bf16.mxu0 0
    %259 = vmatpush2.bf16.msra.mxu0 0
    %260 = vmatprep.subr.bf16.mxu0 0
    %261 = vmatpush2.bf16.msra.mxu0 0
    %262 = vmatprep.subr.bf16.mxu0 0
    %263 = vmatpush2.bf16.msra.mxu0 0
    %264 = vmatprep.mubr.bf16.mxu0 0
    %265 = vmatmul.mubr.bf16.gmra.mxu0 %v95
    %v266 = vpop.f32.mrf.mxu0
    %v267 = vadd.f32 0.0, %v266
    %v268 = vpop.f32.mrf.mxu0
    %v269 = vpop.f32.mrf.mxu0
    %v270 = vadd.f32 0.0, %v269
    %v271 = vpop.f32.mrf.mxu0
    %272 = vdwg.mxu0
    %v273 = vpack.c.bf16 %v270, %v267
    %v275 = vunpack.c.l.b16 %v273
    %v276 = vunpack.c.h.b16 %v273
    %v277 = vpack.c.b16 %v275, %v275
    %v278 = vpack.c.b16 %v276, %v276
    %281 = vst.msk [vmem:[#allocation4] sm:$0xf] %vm146, %v277
    %282 = vst.msk [vmem:[#allocation4 + $0x4] sm:$0xf] %vm146, %v278
    %v283 = vld [vmem:[#allocation2] sm:$0xf]
    %v284 = vld [vmem:[#allocation3] sm:$0xf]
    %v285 = vld [vmem:[#allocation4] sm:$0xf]
    %vm286 = vcmask 130048
    %v288 = vsel %vm286, %v283, 0
    %v291 = vsel %vm286, %v284, 0
    %293 = vmatprep.subr.bf16.mxu0 0
    %294 = vmatpush1.bf16.xpose.msra.mxu0 0
    %295 = vmatprep.subr.bf16.mxu0 0
    %296 = vmatpush1.bf16.xpose.msra.mxu0 0
    %297 = vmatprep.subr.bf16.mxu0 0
    %298 = vmatpush1.bf16.xpose.msra.mxu0 0
    %299 = vmatprep.subr.bf16.mxu0 0
    %300 = vmatpush1.bf16.xpose.msra.mxu0 0
    %301 = vmatprep.subr.bf16.mxu0 0
    %302 = vmatpush1.bf16.xpose.msra.mxu0 0
    %303 = vmatprep.subr.bf16.mxu0 0
    %304 = vmatpush1.bf16.xpose.msra.mxu0 0
    %305 = vmatprep.subr.bf16.mxu0 0
    %306 = vmatpush1.bf16.xpose.msra.mxu0 0
    %307 = vmatprep.subr.bf16.mxu0 0
    %308 = vmatpush1.bf16.xpose.msra.mxu0 %v291
    %309 = vmatprep.subr.bf16.mxu0 0
    %310 = vmatpush2.bf16.xpose.msra.mxu0 0
    %311 = vmatprep.subr.bf16.mxu0 0
    %312 = vmatpush2.bf16.xpose.msra.mxu0 0
    %313 = vmatprep.subr.bf16.mxu0 0
    %314 = vmatpush2.bf16.xpose.msra.mxu0 0
    %315 = vmatprep.subr.bf16.mxu0 0
    %316 = vmatpush2.bf16.xpose.msra.mxu0 0
    %317 = vmatprep.subr.bf16.mxu0 0
    %318 = vmatpush2.bf16.xpose.msra.mxu0 0
    %319 = vmatprep.subr.bf16.mxu0 0
    %320 = vmatpush2.bf16.xpose.msra.mxu0 0
    %321 = vmatprep.subr.bf16.mxu0 0
    %322 = vmatpush2.bf16.xpose.msra.mxu0 0
    %323 = vmatprep.subr.bf16.mxu0 0
    %324 = vmatpush2.bf16.xpose.msra.mxu0 0
    %325 = vmatprep.mubr.bf16.mxu0 0
    %326 = vmatmul.mubr.bf16.gmra.mxu0 %v288
    %v327 = vpop.f32.mrf.mxu0
    %v328 = vadd.f32 0.0, %v327
    %v329 = vpop.f32.mrf.mxu0
    %v330 = vpop.f32.mrf.mxu0
    %v331 = vpop.f32.mrf.mxu0
    %332 = vdwg.mxu0
    %vm333 = vcmask 64512
    %v334 = vsel %vm333, %v328, -inf
    %335 = vmax.xlane.f32.xlu0 %v334
    %v336 = vpop.xlane.xlu0 %335
    %v337 = vsub.f32 %v328, %v336
    %v338 = vmul.f32 %v337, 1.442695
    %v339 = vpow.pop %v338
    %v340 = vsel %vm333, %v339, 0.0
    %341 = vadd.xlane.f32.xlu0 %v340
    %v342 = vpop.xlane.xlu0 %341
    %v343 = vpack.c.bf16 %v339, %v339
    %v345 = vsel %vm333, %v343, 0
    %vm347 = vcmask 1043456
    %v349 = vsel %vm347, %v285, 0
    %351 = vmatprep.subr.bf16.mxu0 0
    %352 = vmatpush1.bf16.msra.mxu0 0
    %353 = vmatprep.subr.bf16.mxu0 0
    %354 = vmatpush1.bf16.msra.mxu0 0
    %355 = vmatprep.subr.bf16.mxu0 0
    %356 = vmatpush1.bf16.msra.mxu0 0
    %357 = vmatprep.subr.bf16.mxu0 0
    %358 = vmatpush1.bf16.msra.mxu0 0
    %359 = vmatprep.subr.bf16.mxu0 0
    %360 = vmatpush1.bf16.msra.mxu0 0
    %361 = vmatprep.subr.bf16.mxu0 0
    %362 = vmatpush1.bf16.msra.mxu0 0
    %363 = vmatprep.subr.bf16.mxu0 0
    %364 = vmatpush1.bf16.msra.mxu0 0
    %365 = vmatprep.subr.bf16.mxu0 0
    %366 = vmatpush1.bf16.msra.mxu0 %v349
    %367 = vmatprep.subr.bf16.mxu0 0
    %368 = vmatpush2.bf16.msra.mxu0 0
    %369 = vmatprep.subr.bf16.mxu0 0
    %370 = vmatpush2.bf16.msra.mxu0 0
    %371 = vmatprep.subr.bf16.mxu0 0
    %372 = vmatpush2.bf16.msra.mxu0 0
    %373 = vmatprep.subr.bf16.mxu0 0
    %374 = vmatpush2.bf16.msra.mxu0 0
    %375 = vmatprep.subr.bf16.mxu0 0
    %376 = vmatpush2.bf16.msra.mxu0 0
    %377 = vmatprep.subr.bf16.mxu0 0
    %378 = vmatpush2.bf16.msra.mxu0 0
    %379 = vmatprep.subr.bf16.mxu0 0
    %380 = vmatpush2.bf16.msra.mxu0 0
    %381 = vmatprep.subr.bf16.mxu0 0
    %382 = vmatpush2.bf16.msra.mxu0 0
    %383 = vmatprep.mubr.bf16.mxu0 0
    %384 = vmatmul.mubr.bf16.gmra.mxu0 %v345
    %v385 = vpop.f32.mrf.mxu0
    %v386 = vadd.f32 0.0, %v385
    %v387 = vpop.f32.mrf.mxu0
    %v388 = vpop.f32.mrf.mxu0
    %v389 = vpop.f32.mrf.mxu0
    %390 = vdwg.mxu0
    %v391 = vrcp.pop %v342
    %v392 = vmul.f32 %v386, %v391
    %393 = vst.msk [vmem:[#allocation13] sm:$0xff] %vm286, %v392
    %v394 = vld [vmem:[#allocation2] sm:$0xf]
    %v395 = vld [vmem:[#allocation3] sm:$0xf]
    %v396 = vld [vmem:[#allocation4] sm:$0xf]
    %v398 = vunpack.c.l.b16 %v394
    %v399 = vpack.c.b16 %v398, %v398
    %400 = vrot.lane.b32.xlu0 %v399, 112
    %v401 = vpop.permute.xlu0 %400
    %v403 = vunpack.c.l.b16 %v395
    %v404 = vpack.c.b16 %v403, %v403
    %405 = vrot.lane.b32.xlu0 %v404, 112
    %v406 = vpop.permute.xlu0 %405
    %v408 = vsel %vm286, %v401, 0
    %v411 = vsel %vm286, %v406, 0
    %413 = vmatprep.subr.bf16.mxu0 0
    %414 = vmatpush1.bf16.xpose.msra.mxu0 0
    %415 = vmatprep.subr.bf16.mxu0 0
    %416 = vmatpush1.bf16.xpose.msra.mxu0 0
    %417 = vmatprep.subr.bf16.mxu0 0
    %418 = vmatpush1.bf16.xpose.msra.mxu0 0
    %419 = vmatprep.subr.bf16.mxu0 0
    %420 = vmatpush1.bf16.xpose.msra.mxu0 0
    %421 = vmatprep.subr.bf16.mxu0 0
    %422 = vmatpush1.bf16.xpose.msra.mxu0 0
    %423 = vmatprep.subr.bf16.mxu0 0
    %424 = vmatpush1.bf16.xpose.msra.mxu0 0
    %425 = vmatprep.subr.bf16.mxu0 0
    %426 = vmatpush1.bf16.xpose.msra.mxu0 0
    %427 = vmatprep.subr.bf16.mxu0 0
    %428 = vmatpush1.bf16.xpose.msra.mxu0 %v411
    %429 = vmatprep.subr.bf16.mxu0 0
    %430 = vmatpush2.bf16.xpose.msra.mxu0 0
    %431 = vmatprep.subr.bf16.mxu0 0
    %432 = vmatpush2.bf16.xpose.msra.mxu0 0
    %433 = vmatprep.subr.bf16.mxu0 0
    %434 = vmatpush2.bf16.xpose.msra.mxu0 0
    %435 = vmatprep.subr.bf16.mxu0 0
    %436 = vmatpush2.bf16.xpose.msra.mxu0 0
    %437 = vmatprep.subr.bf16.mxu0 0
    %438 = vmatpush2.bf16.xpose.msra.mxu0 0
    %439 = vmatprep.subr.bf16.mxu0 0
    %440 = vmatpush2.bf16.xpose.msra.mxu0 0
    %441 = vmatprep.subr.bf16.mxu0 0
    %442 = vmatpush2.bf16.xpose.msra.mxu0 0
    %443 = vmatprep.subr.bf16.mxu0 0
    %444 = vmatpush2.bf16.xpose.msra.mxu0 0
    %445 = vmatprep.mubr.bf16.mxu0 0
    %446 = vmatmul.mubr.bf16.gmra.mxu0 %v408
    %v447 = vpop.f32.mrf.mxu0
    %v448 = vadd.f32 0.0, %v447
    %v449 = vpop.f32.mrf.mxu0
    %v450 = vpop.f32.mrf.mxu0
    %v451 = vpop.f32.mrf.mxu0
    %452 = vdwg.mxu0
    %v453 = vsel %vm333, %v448, -inf
    %454 = vmax.xlane.f32.xlu0 %v453
    %v455 = vpop.xlane.xlu0 %454
    %v456 = vsub.f32 %v448, %v455
    %v457 = vmul.f32 %v456, 1.442695
    %v458 = vpow.pop %v457
    %v459 = vsel %vm333, %v458, 0.0
    %460 = vadd.xlane.f32.xlu0 %v459
    %v461 = vpop.xlane.xlu0 %460
    %v462 = vpack.c.bf16 %v458, %v458
    %v464 = vunpack.c.l.b16 %v396
    %v465 = vpack.c.b16 %v464, %v464
    %466 = vrot.lane.b32.xlu0 %v465, 112
    %v467 = vpop.permute.xlu0 %466
    %v469 = vsel %vm333, %v462, 0
    %v472 = vsel %vm347, %v467, 0
    %474 = vmatprep.subr.bf16.mxu0 0
    %475 = vmatpush1.bf16.msra.mxu0 0
    %476 = vmatprep.subr.bf16.mxu0 0
    %477 = vmatpush1.bf16.msra.mxu0 0
    %478 = vmatprep.subr.bf16.mxu0 0
    %479 = vmatpush1.bf16.msra.mxu0 0
    %480 = vmatprep.subr.bf16.mxu0 0
    %481 = vmatpush1.bf16.msra.mxu0 0
    %482 = vmatprep.subr.bf16.mxu0 0
    %483 = vmatpush1.bf16.msra.mxu0 0
    %484 = vmatprep.subr.bf16.mxu0 0
    %485 = vmatpush1.bf16.msra.mxu0 0
    %486 = vmatprep.subr.bf16.mxu0 0
    %487 = vmatpush1.bf16.msra.mxu0 0
    %488 = vmatprep.subr.bf16.mxu0 0
    %489 = vmatpush1.bf16.msra.mxu0 %v472
    %490 = vmatprep.subr.bf16.mxu0 0
    %491 = vmatpush2.bf16.msra.mxu0 0
    %492 = vmatprep.subr.bf16.mxu0 0
    %493 = vmatpush2.bf16.msra.mxu0 0
    %494 = vmatprep.subr.bf16.mxu0 0
    %495 = vmatpush2.bf16.msra.mxu0 0
    %496 = vmatprep.subr.bf16.mxu0 0
    %497 = vmatpush2.bf16.msra.mxu0 0
    %498 = vmatprep.subr.bf16.mxu0 0
    %499 = vmatpush2.bf16.msra.mxu0 0
    %500 = vmatprep.subr.bf16.mxu0 0
    %501 = vmatpush2.bf16.msra.mxu0 0
    %502 = vmatprep.subr.bf16.mxu0 0
    %503 = vmatpush2.bf16.msra.mxu0 0
    %504 = vmatprep.subr.bf16.mxu0 0
    %505 = vmatpush2.bf16.msra.mxu0 0
    %506 = vmatprep.mubr.bf16.mxu0 0
    %507 = vmatmul.mubr.bf16.gmra.mxu0 %v469
    %v508 = vpop.f32.mrf.mxu0
    %v509 = vadd.f32 0.0, %v508
    %v510 = vpop.f32.mrf.mxu0
    %v511 = vpop.f32.mrf.mxu0
    %v512 = vpop.f32.mrf.mxu0
    %513 = vdwg.mxu0
    %v514 = vrcp.pop %v461
    %v515 = vmul.f32 %v509, %v514
    %517 = vrot.lane.b32.xlu0 %v515, 16
    %v518 = vpop.permute.xlu0 %517
    %vm520 = vcmask 261248
    %521 = vst.msk [vmem:[#allocation13] sm:$0xff] %vm520, %v518
    %v522 = vld [vmem:[#allocation2 + $0x4] sm:$0xf]
    %v523 = vld [vmem:[#allocation3 + $0x4] sm:$0xf]
    %v524 = vld [vmem:[#allocation4 + $0x4] sm:$0xf]
    %v526 = vsel %vm286, %v522, 0
    %v529 = vsel %vm286, %v523, 0
    %531 = vmatprep.subr.bf16.mxu0 0
    %532 = vmatpush1.bf16.xpose.msra.mxu0 0
    %533 = vmatprep.subr.bf16.mxu0 0
    %534 = vmatpush1.bf16.xpose.msra.mxu0 0
    %535 = vmatprep.subr.bf16.mxu0 0
    %536 = vmatpush1.bf16.xpose.msra.mxu0 0
    %537 = vmatprep.subr.bf16.mxu0 0
    %538 = vmatpush1.bf16.xpose.msra.mxu0 0
    %539 = vmatprep.subr.bf16.mxu0 0
    %540 = vmatpush1.bf16.xpose.msra.mxu0 0
    %541 = vmatprep.subr.bf16.mxu0 0
    %542 = vmatpush1.bf16.xpose.msra.mxu0 0
    %543 = vmatprep.subr.bf16.mxu0 0
    %544 = vmatpush1.bf16.xpose.msra.mxu0 0
    %545 = vmatprep.subr.bf16.mxu0 0
    %546 = vmatpush1.bf16.xpose.msra.mxu0 %v529
    %547 = vmatprep.subr.bf16.mxu0 0
    %548 = vmatpush2.bf16.xpose.msra.mxu0 0
    %549 = vmatprep.subr.bf16.mxu0 0
    %550 = vmatpush2.bf16.xpose.msra.mxu0 0
    %551 = vmatprep.subr.bf16.mxu0 0
    %552 = vmatpush2.bf16.xpose.msra.mxu0 0
    %553 = vmatprep.subr.bf16.mxu0 0
    %554 = vmatpush2.bf16.xpose.msra.mxu0 0
    %555 = vmatprep.subr.bf16.mxu0 0
    %556 = vmatpush2.bf16.xpose.msra.mxu0 0
    %557 = vmatprep.subr.bf16.mxu0 0
    %558 = vmatpush2.bf16.xpose.msra.mxu0 0
    %559 = vmatprep.subr.bf16.mxu0 0
    %560 = vmatpush2.bf16.xpose.msra.mxu0 0
    %561 = vmatprep.subr.bf16.mxu0 0
    %562 = vmatpush2.bf16.xpose.msra.mxu0 0
    %563 = vmatprep.mubr.bf16.mxu0 0
    %564 = vmatmul.mubr.bf16.gmra.mxu0 %v526
    %v565 = vpop.f32.mrf.mxu0
    %v566 = vadd.f32 0.0, %v565
    %v567 = vpop.f32.mrf.mxu0
    %v568 = vpop.f32.mrf.mxu0
    %v569 = vpop.f32.mrf.mxu0
    %570 = vdwg.mxu0
    %v571 = vsel %vm333, %v566, -inf
    %572 = vmax.xlane.f32.xlu0 %v571
    %v573 = vpop.xlane.xlu0 %572
    %v574 = vsub.f32 %v566, %v573
    %v575 = vmul.f32 %v574, 1.442695
    %v576 = vpow.pop %v575
    %v577 = vsel %vm333, %v576, 0.0
    %578 = vadd.xlane.f32.xlu0 %v577
    %v579 = vpop.xlane.xlu0 %578
    %v580 = vpack.c.bf16 %v576, %v576
    %v582 = vsel %vm333, %v580, 0
    %v585 = vsel %vm347, %v524, 0
    %587 = vmatprep.subr.bf16.mxu0 0
    %588 = vmatpush1.bf16.msra.mxu0 0
    %589 = vmatprep.subr.bf16.mxu0 0
    %590 = vmatpush1.bf16.msra.mxu0 0
    %591 = vmatprep.subr.bf16.mxu0 0
    %592 = vmatpush1.bf16.msra.mxu0 0
    %593 = vmatprep.subr.bf16.mxu0 0
    %594 = vmatpush1.bf16.msra.mxu0 0
    %595 = vmatprep.subr.bf16.mxu0 0
    %596 = vmatpush1.bf16.msra.mxu0 0
    %597 = vmatprep.subr.bf16.mxu0 0
    %598 = vmatpush1.bf16.msra.mxu0 0
    %599 = vmatprep.subr.bf16.mxu0 0
    %600 = vmatpush1.bf16.msra.mxu0 0
    %601 = vmatprep.subr.bf16.mxu0 0
    %602 = vmatpush1.bf16.msra.mxu0 %v585
    %603 = vmatprep.subr.bf16.mxu0 0
    %604 = vmatpush2.bf16.msra.mxu0 0
    %605 = vmatprep.subr.bf16.mxu0 0
    %606 = vmatpush2.bf16.msra.mxu0 0
    %607 = vmatprep.subr.bf16.mxu0 0
    %608 = vmatpush2.bf16.msra.mxu0 0
    %609 = vmatprep.subr.bf16.mxu0 0
    %610 = vmatpush2.bf16.msra.mxu0 0
    %611 = vmatprep.subr.bf16.mxu0 0
    %612 = vmatpush2.bf16.msra.mxu0 0
    %613 = vmatprep.subr.bf16.mxu0 0
    %614 = vmatpush2.bf16.msra.mxu0 0
    %615 = vmatprep.subr.bf16.mxu0 0
    %616 = vmatpush2.bf16.msra.mxu0 0
    %617 = vmatprep.subr.bf16.mxu0 0
    %618 = vmatpush2.bf16.msra.mxu0 0
    %619 = vmatprep.mubr.bf16.mxu0 0
    %620 = vmatmul.mubr.bf16.gmra.mxu0 %v582
    %v621 = vpop.f32.mrf.mxu0
    %v622 = vadd.f32 0.0, %v621
    %v623 = vpop.f32.mrf.mxu0
    %v624 = vpop.f32.mrf.mxu0
    %v625 = vpop.f32.mrf.mxu0
    %626 = vdwg.mxu0
    %v627 = vrcp.pop %v579
    %v628 = vmul.f32 %v622, %v627
    %s629 = scalar_lea.vmem [#allocation13], 8
    %630 = vst.msk [vmem:[%s629] sm:$0xff] %vm286, %v628
    %v631 = vld [vmem:[#allocation2 + $0x4] sm:$0xf]
    %v632 = vld [vmem:[#allocation3 + $0x4] sm:$0xf]
    %v633 = vld [vmem:[#allocation4 + $0x4] sm:$0xf]
    %v635 = vunpack.c.l.b16 %v631
    %v636 = vpack.c.b16 %v635, %v635
    %637 = vrot.lane.b32.xlu0 %v636, 112
    %v638 = vpop.permute.xlu0 %637
    %v640 = vunpack.c.l.b16 %v632
    %v641 = vpack.c.b16 %v640, %v640
    %642 = vrot.lane.b32.xlu0 %v641, 112
    %v643 = vpop.permute.xlu0 %642
    %v645 = vsel %vm286, %v638, 0
    %v648 = vsel %vm286, %v643, 0
    %650 = vmatprep.subr.bf16.mxu0 0
    %651 = vmatpush1.bf16.xpose.msra.mxu0 0
    %652 = vmatprep.subr.bf16.mxu0 0
    %653 = vmatpush1.bf16.xpose.msra.mxu0 0
    %654 = vmatprep.subr.bf16.mxu0 0
    %655 = vmatpush1.bf16.xpose.msra.mxu0 0
    %656 = vmatprep.subr.bf16.mxu0 0
    %657 = vmatpush1.bf16.xpose.msra.mxu0 0
    %658 = vmatprep.subr.bf16.mxu0 0
    %659 = vmatpush1.bf16.xpose.msra.mxu0 0
    %660 = vmatprep.subr.bf16.mxu0 0
    %661 = vmatpush1.bf16.xpose.msra.mxu0 0
    %662 = vmatprep.subr.bf16.mxu0 0
    %663 = vmatpush1.bf16.xpose.msra.mxu0 0
    %664 = vmatprep.subr.bf16.mxu0 0
    %665 = vmatpush1.bf16.xpose.msra.mxu0 %v648
    %666 = vmatprep.subr.bf16.mxu0 0
    %667 = vmatpush2.bf16.xpose.msra.mxu0 0
    %668 = vmatprep.subr.bf16.mxu0 0
    %669 = vmatpush2.bf16.xpose.msra.mxu0 0
    %670 = vmatprep.subr.bf16.mxu0 0
    %671 = vmatpush2.bf16.xpose.msra.mxu0 0
    %672 = vmatprep.subr.bf16.mxu0 0
    %673 = vmatpush2.bf16.xpose.msra.mxu0 0
    %674 = vmatprep.subr.bf16.mxu0 0
    %675 = vmatpush2.bf16.xpose.msra.mxu0 0
    %676 = vmatprep.subr.bf16.mxu0 0
    %677 = vmatpush2.bf16.xpose.msra.mxu0 0
    %678 = vmatprep.subr.bf16.mxu0 0
    %679 = vmatpush2.bf16.xpose.msra.mxu0 0
    %680 = vmatprep.subr.bf16.mxu0 0
    %681 = vmatpush2.bf16.xpose.msra.mxu0 0
    %682 = vmatprep.mubr.bf16.mxu0 0
    %683 = vmatmul.mubr.bf16.gmra.mxu0 %v645
    %v684 = vpop.f32.mrf.mxu0
    %v685 = vadd.f32 0.0, %v684
    %v686 = vpop.f32.mrf.mxu0
    %v687 = vpop.f32.mrf.mxu0
    %v688 = vpop.f32.mrf.mxu0
    %689 = vdwg.mxu0
    %v690 = vsel %vm333, %v685, -inf
    %691 = vmax.xlane.f32.xlu0 %v690
    %v692 = vpop.xlane.xlu0 %691
    %v693 = vsub.f32 %v685, %v692
    %v694 = vmul.f32 %v693, 1.442695
    %v695 = vpow.pop %v694
    %v696 = vsel %vm333, %v695, 0.0
    %697 = vadd.xlane.f32.xlu0 %v696
    %v698 = vpop.xlane.xlu0 %697
    %v699 = vpack.c.bf16 %v695, %v695
    %v701 = vunpack.c.l.b16 %v633
    %v702 = vpack.c.b16 %v701, %v701
    %703 = vrot.lane.b32.xlu0 %v702, 112
    %v704 = vpop.permute.xlu0 %703
    %v706 = vsel %vm333, %v699, 0
    %v709 = vsel %vm347, %v704, 0
    %711 = vmatprep.subr.bf16.mxu0 0
    %712 = vmatpush1.bf16.msra.mxu0 0
    %713 = vmatprep.subr.bf16.mxu0 0
    %714 = vmatpush1.bf16.msra.mxu0 0
    %715 = vmatprep.subr.bf16.mxu0 0
    %716 = vmatpush1.bf16.msra.mxu0 0
    %717 = vmatprep.subr.bf16.mxu0 0
    %718 = vmatpush1.bf16.msra.mxu0 0
    %719 = vmatprep.subr.bf16.mxu0 0
    %720 = vmatpush1.bf16.msra.mxu0 0
    %721 = vmatprep.subr.bf16.mxu0 0
    %722 = vmatpush1.bf16.msra.mxu0 0
    %723 = vmatprep.subr.bf16.mxu0 0
    %724 = vmatpush1.bf16.msra.mxu0 0
    %725 = vmatprep.subr.bf16.mxu0 0
    %726 = vmatpush1.bf16.msra.mxu0 %v709
    %727 = vmatprep.subr.bf16.mxu0 0
    %728 = vmatpush2.bf16.msra.mxu0 0
    %729 = vmatprep.subr.bf16.mxu0 0
    %730 = vmatpush2.bf16.msra.mxu0 0
    %731 = vmatprep.subr.bf16.mxu0 0
    %732 = vmatpush2.bf16.msra.mxu0 0
    %733 = vmatprep.subr.bf16.mxu0 0
    %734 = vmatpush2.bf16.msra.mxu0 0
    %735 = vmatprep.subr.bf16.mxu0 0
    %736 = vmatpush2.bf16.msra.mxu0 0
    %737 = vmatprep.subr.bf16.mxu0 0
    %738 = vmatpush2.bf16.msra.mxu0 0
    %739 = vmatprep.subr.bf16.mxu0 0
    %740 = vmatpush2.bf16.msra.mxu0 0
    %741 = vmatprep.subr.bf16.mxu0 0
    %742 = vmatpush2.bf16.msra.mxu0 0
    %743 = vmatprep.mubr.bf16.mxu0 0
    %744 = vmatmul.mubr.bf16.gmra.mxu0 %v706
    %v745 = vpop.f32.mrf.mxu0
    %v746 = vadd.f32 0.0, %v745
    %v747 = vpop.f32.mrf.mxu0
    %v748 = vpop.f32.mrf.mxu0
    %v749 = vpop.f32.mrf.mxu0
    %750 = vdwg.mxu0
    %v751 = vrcp.pop %v698
    %v752 = vmul.f32 %v746, %v751
    %754 = vrot.lane.b32.xlu0 %v752, 16
    %v755 = vpop.permute.xlu0 %754
    %757 = vst.msk [vmem:[%s629] sm:$0xff] %vm520, %v755
    // Predicated region
    $region34: #{tpu_custom_call.1} parent=1 // pred_check
      _
    $region35: #{tpu_custom_call.1} parent=1 // pred_check_branch
      %759 = sbr.rel (0) target = $region37
    $region36: #{tpu_custom_call.1} parent=1 // pred_region
      %s761 = ssub.s32 256, 256
      %762 = vsyncadd [#allocation7], %s761
      %s763 = sshll.u32 [#allocation13], 4
      %s764 = int_to_ptr.vmem [resolvable:$true] %s763
      %769 = dma.vmem_to_hbm [thread:$0]  %s764, 256, %s4, [#allocation7], 128, 128, 8
    $region37: #{tpu_custom_call.1} parent=1 // pred_fallthru
      _
    // Predicated region
    $region38: #{tpu_custom_call.1} parent=1 // pred_check
      _
    $region39: #{tpu_custom_call.1} parent=1 // pred_check_branch
      %771 = sbr.rel (0) target = $region41
    $region40: #{tpu_custom_call.1} parent=1 // pred_region
      %772 = dma.done [#allocation7], 256
    $region41: #{tpu_custom_call.1} parent=1 // pred_fallthru
      _
    %773 = vsyncpa [#allocation6], 1
    %774 = vsyncpa [#allocation9], 1
    %775 = vsyncpa [#allocation12], 1
    %776 = vsyncpa [#allocation7], 1

</llo_original>
